<compile_context>
chip_gen: v6e
topology: v6e:2x2x1
jax: 0.10.0
libtpu: 0.0.40
codegen_flags: <defaults>
</compile_context>

<pallas_src>
import numpy as np
import jax
import jax.numpy as jnp
from jax.experimental import pallas as pl
from jax.experimental.pallas import tpu as pltpu

# ---- fixed perception filters (match texture_nca.py) -----------------------
IDENT = ((0.0, 0.0, 0.0),
         (0.0, 1.0, 0.0),
         (0.0, 0.0, 0.0))
SOBEL_X = tuple(tuple(v / 8.0 for v in row)
                for row in ((-1.0, 0.0, 1.0), (-2.0, 0.0, 2.0), (-1.0, 0.0, 1.0)))
SOBEL_Y = tuple(tuple(SOBEL_X[v][u] for v in range(3)) for u in range(3))  # sobel_x.T
LAP = tuple(tuple(v / 16.0 for v in row)
            for row in ((1.0, 2.0, 1.0), (2.0, -12.0, 2.0), (1.0, 2.0, 1.0)))
FILTERS = (IDENT, SOBEL_X, SOBEL_Y, LAP)      # torch.stack([ident, sobel_x, sobel_x.T, lap])


# ---- Pallas kernel ----------------------------------------------------------
def _make_ca_kernel(h, w, compute_dtype):
    """Per-image kernel: perception + conv1 + relu + conv2 + masked residual."""
    hw = h * w
    # XLU lane rotate when the lane dim is 128-aligned; jnp.roll (slice+concat)
    # as a safe fallback for odd spatial sizes.
    use_xlu_roll = (hw % 128 == 0)

    def lane_roll(x, shift):
        shift = int(shift) % hw
        if shift == 0:
            return x
        if use_xlu_roll:
            return pltpu.roll(x, shift, 1)
        return jnp.roll(x, shift, axis=1)

    def kernel(x_ref, m_ref, w1t_ref, b1_ref, w2_ref, o_ref):
        chn = x_ref.shape[1]
        x = x_ref[0]                                     # [chn, hw]  f32

        # Column-boundary masks for the +/-1 w-shifts (a plain lane roll would
        # wrap row-end pixels into the neighbouring row).
        col = jax.lax.broadcasted_iota(jnp.int32, (1, hw), 1) % w
        first_col = col == 0
        last_col = col == (w - 1)

        # w-axis circularly shifted variants of x (shift by +1 / 0 / -1).
        r1 = lane_roll(x, 1)
        xr = jnp.where(first_col, lane_roll(r1, hw - w), r1)    # dw = +1
        l1 = lane_roll(x, hw - 1)
        xl = jnp.where(last_col, lane_roll(l1, w), l1)          # dw = -1
        variants = (xr, x, xl)                                  # v = 0, 1, 2

        # h-axis shifts are exact lane rolls by multiples of w.  Stack all 9
        # shifted copies along the contraction dim (k = (u*3+v)*chn + c) and
        # run perception + first 1x1 conv as a single K = 9*chn MXU matmul.
        parts = []
        for u in range(3):
            dh = (1 - u) % h
            for xv in variants:
                parts.append(lane_roll(xv, dh * w))
        xs = jnp.concatenate(parts, axis=0).astype(compute_dtype)   # [9*chn, hw]

        acc = jnp.dot(w1t_ref[...], xs, preferred_element_type=jnp.float32)
        hid = jnp.maximum(acc + b1_ref[...], 0.0).astype(compute_dtype)    # [hidden, hw]
        y = jnp.dot(w2_ref[...], hid, preferred_element_type=jnp.float32)  # [chn, hw]

        # Stochastic-update residual; everything lane-dense (hw on lanes).
        o_ref[0] = x + y * m_ref[0]

    return kernel


# ---- VMEM budgeting ---------------------------------------------------------
def _vmem_limit_bytes(chn, hidden_n, hw, cbytes):
    """Explicit per-grid-step footprint estimate -> vmem_limit_bytes."""
    def rup(n, m):
        return -(-n // m) * m
    lane = rup(hw, 128)
    c8 = rup(chn, 8)
    k8 = rup(9 * chn, 8)
    n8 = rup(hidden_n, 8)
    est = 0
    est += 2 * c8 * lane * 4                      # x input block (double-buffered)
    est += 2 * 8 * lane * 4                       # update-mask block
    est += 2 * c8 * lane * 4                      # output block
    est += 2 * (n8 * rup(9 * chn, 128) * cbytes   # W1_eff^T
                + n8 * 128 * 4                    # b1
                + c8 * rup(hidden_n, 128) * cbytes)  # W2
    est += 5 * c8 * lane * 4                      # shifted-variant temporaries (f32)
    est += k8 * lane * 4                          # stacked xs (f32)
    est += k8 * lane * cbytes                     # xs cast to compute dtype
    est += n8 * lane * 4                          # layer-1 accumulator (f32)
    est += n8 * lane * cbytes                     # hid cast
    est += c8 * lane * 4                          # layer-2 result (f32)
    est = int(1.25 * est) + (2 << 20)             # compiler temporaries / slack
    # 48 MiB cap keeps headroom on v7x (64 MiB physical per TensorCore);
    # v5e/v6e have 128 MiB physical so the cap is always safe.
    return max(32 << 20, min(est, 48 << 20))


# ---- wrapper ----------------------------------------------------------------
def ca_forward_pallas(x_nchw, w1, b1, w2, mask_nchw, *, chn, hidden_n,
                      compute_dtype=jnp.bfloat16):
    """x_nchw: [b, chn, h, w]; w1: [hidden, chn*4] (torch c*4+f order);
    b1: [hidden]; w2: [chn, hidden]; mask_nchw: [b, 1, h, w]."""
    b, c, h, w = x_nchw.shape
    assert c == chn
    hw = h * w

    # Fold the fixed 3x3 filters into W1, laid out for a single K = 9*chn
    # contraction:  W1T[n, s*chn + c] = sum_f FILTERS[f][u][v] * w1[n, c*4+f],
    # with s = u*3 + v matching the in-kernel shift stacking order.
    filt = jnp.asarray(np.asarray(FILTERS, dtype=np.float32))           # [4, 3, 3]
    w1_ncf = jnp.asarray(w1, jnp.float32).reshape(hidden_n, chn, 4)     # torch order c*4+f
    w1e = jnp.einsum('fuv,ncf->uvcn', filt, w1_ncf).reshape(9, chn, hidden_n)
    w1t = jnp.transpose(w1e, (2, 0, 1)).reshape(hidden_n, 9 * chn).astype(compute_dtype)
    b1_k = jnp.asarray(b1, jnp.float32).reshape(hidden_n, 1)            # lane-broadcast bias
    w2_k = jnp.asarray(w2, jnp.float32).astype(compute_dtype)           # [chn, hidden]

    # Lane-dense chn-major inputs: free reshapes of NCHW, no transpose.
    x_cm = jnp.asarray(x_nchw, jnp.float32).reshape(b, chn, hw)
    m_cm = jnp.asarray(mask_nchw, jnp.float32).reshape(b, 1, hw)

    kernel = _make_ca_kernel(h, w, compute_dtype)
    vmem_limit = _vmem_limit_bytes(chn, hidden_n, hw, jnp.dtype(compute_dtype).itemsize)

    out = pl.pallas_call(
        kernel,
        out_shape=jax.ShapeDtypeStruct((b, chn, hw), jnp.float32),
        grid=(b,),                                              # one image per step
        in_specs=[
            pl.BlockSpec((1, chn, hw), lambda i: (i, 0, 0)),    # x   (chn-major, lane-dense)
            pl.BlockSpec((1, 1, hw), lambda i: (i, 0, 0)),      # update mask
            pl.BlockSpec((hidden_n, 9 * chn), lambda i: (0, 0)),  # W1_eff^T
            pl.BlockSpec((hidden_n, 1), lambda i: (0, 0)),        # b1
            pl.BlockSpec((chn, hidden_n), lambda i: (0, 0)),      # W2
        ],
        out_specs=pl.BlockSpec((1, chn, hw), lambda i: (i, 0, 0)),
        compiler_params=pltpu.CompilerParams(
            dimension_semantics=("parallel",),
            vmem_limit_bytes=vmem_limit),
    )(x_cm, m_cm, w1t, b1_k, w2_k)

    return out.reshape(b, chn, h, w)                # free reshape back to NCHW


# ---- independent pure-JAX reference (mirrors the PyTorch code, NCHW) --------
def ca_forward_ref(x, w1, b1, w2, mask):
    filters = jnp.asarray(np.array(FILTERS, dtype=np.float32))          # [4, 3, 3]
    b, c, h, w = x.shape
    xp = jnp.pad(x.reshape(b * c, 1, h, w), ((0, 0), (0, 0), (1, 1), (1, 1)), mode="wrap")
    y = jax.lax.conv_general_dilated(
        xp, filters[:, None], window_strides=(1, 1), padding="VALID",
        dimension_numbers=("NCHW", "OIHW", "NCHW"))
    y = y.reshape(b, c * 4, h, w)                                       # order c*4+f
    hid = jax.nn.relu(jnp.einsum("oc,bchw->bohw", w1, y) + b1[None, :, None, None])
    y2 = jnp.einsum("oc,bchw->bohw", w2, hid)
    return x + y2 * mask


# ---- demo -------------------------------------------------------------------
if __name__ == "__main__":
    chn, hidden_n = 12, 96
    b, h, w = 2, 16, 16
    update_rate = 0.5

    key = jax.random.PRNGKey(0)
    kx, k1, kb, k2, km = jax.random.split(key, 5)

    x = jax.random.normal(kx, (b, chn, h, w), jnp.float32)
    # NOTE: the PyTorch module zero-inits w2; small random weights exercise the hot path.
    w1 = jax.random.normal(k1, (hidden_n, chn * 4), jnp.float32) * 0.1
    b1v = jax.random.normal(kb, (hidden_n,), jnp.float32) * 0.1
    w2 = jax.random.normal(k2, (chn, hidden_n), jnp.float32) * 0.1

    # torch: (rand(b,1,h,w) + update_rate).floor()  -> Bernoulli(update_rate) mask.
    # TODO(synk): mask RNG uses jax.random (distribution-equivalent to torch.rand, not bit-equal).
    mask = jnp.floor(jax.random.uniform(km, (b, 1, h, w), jnp.float32) + update_rate)

    ref = ca_forward_ref(x, w1, b1v, w2, mask)

    # f32 compute path (faithful to the f32 PyTorch module).
    out_f32 = jax.block_until_ready(
        ca_forward_pallas(x, w1, b1v, w2, mask, chn=chn, hidden_n=hidden_n,
                          compute_dtype=jnp.float32))
    np.testing.assert_allclose(np.asarray(out_f32), np.asarray(ref), rtol=1e-4, atol=1e-4)

    # Default bf16-operand / f32-accumulate MXU path (looser tolerance).
    out_bf16 = jax.block_until_ready(
        ca_forward_pallas(x, w1, b1v, w2, mask, chn=chn, hidden_n=hidden_n))
    np.testing.assert_allclose(np.asarray(out_bf16), np.asarray(ref), rtol=3e-2, atol=3e-2)

    print("KERNEL_OK")
</pallas_src>

<mosaic_0001>
module attributes {stable_mosaic.version = 11 : i64} {
  func.func @kernel(%arg0: i32, %arg1: memref<1x12x256xf32, #tpu.memory_space<vmem>>, %arg2: memref<1x1x256xf32, #tpu.memory_space<vmem>>, %arg3: memref<96x108xf32, #tpu.memory_space<vmem>>, %arg4: memref<96x1xf32, #tpu.memory_space<vmem>>, %arg5: memref<12x96xf32, #tpu.memory_space<vmem>>, %arg6: memref<1x12x256xf32, #tpu.memory_space<vmem>>) attributes {dimension_semantics = [#tpu.dimension_semantics<parallel>], iteration_bounds = array<i64: 2>, scalar_prefetch = 0 : i64, scratch_operands = 0 : i64, tpu.core_type = #tpu.core_type<tc>, window_params = [{transform_indices = @transform_0, window_bounds = array<i64: 1, 12, 256>}, {transform_indices = @transform_1, window_bounds = array<i64: 1, 1, 256>}, {pipeline_mode = #tpu.pipeline_mode<synchronous>, transform_indices = @transform_2, window_bounds = array<i64: 96, 108>}, {pipeline_mode = #tpu.pipeline_mode<synchronous>, transform_indices = @transform_3, window_bounds = array<i64: 96, 1>}, {pipeline_mode = #tpu.pipeline_mode<synchronous>, transform_indices = @transform_4, window_bounds = array<i64: 12, 96>}, {transform_indices = @transform_5, window_bounds = array<i64: 1, 12, 256>}]} {
    %c0 = arith.constant 0 : index
    %c0_0 = arith.constant 0 : index
    %c0_1 = arith.constant 0 : index
    %0 = vector.load %arg1[%c0, %c0_0, %c0_1] : memref<1x12x256xf32, #tpu.memory_space<vmem>>, vector<1x12x256xf32>
    %1 = vector.shape_cast %0 : vector<1x12x256xf32> to vector<12x256xf32>
    %2 = tpu.iota {dimensions = array<i32: 1>} : vector<1x256xi32>
    %c16_i32 = arith.constant 16 : i32
    %c0_i32 = arith.constant 0 : i32
    %3 = arith.cmpi eq, %c16_i32, %c0_i32 : i32
    %c1_i32 = arith.constant 1 : i32
    %4 = arith.select %3, %c1_i32, %c16_i32 : i32
    %5 = vector.broadcast %4 : i32 to vector<1x256xi32>
    %6 = arith.remsi %2, %5 : vector<1x256xi32>
    %c0_i32_2 = arith.constant 0 : i32
    %7 = vector.broadcast %c0_i32_2 : i32 to vector<1x256xi32>
    %8 = arith.cmpi ne, %6, %7 : vector<1x256xi32>
    %c0_i32_3 = arith.constant 0 : i32
    %9 = vector.broadcast %c0_i32_3 : i32 to vector<1x256xi32>
    %10 = arith.cmpi slt, %6, %9 : vector<1x256xi32>
    %c0_i32_4 = arith.constant 0 : i32
    %11 = arith.cmpi slt, %4, %c0_i32_4 : i32
    %12 = vector.broadcast %11 : i1 to vector<1x256xi1>
    %13 = vector.broadcast %12 : vector<1x256xi1> to vector<1x256xi1>
    %14 = arith.xori %10, %13 : vector<1x256xi1>
    %15 = arith.andi %14, %8 : vector<1x256xi1>
    %16 = vector.broadcast %4 : i32 to vector<1x256xi32>
    %17 = arith.addi %6, %16 : vector<1x256xi32>
    %18 = arith.select %15, %17, %6 : vector<1x256xi1>, vector<1x256xi32>
    %c0_i32_5 = arith.constant 0 : i32
    %19 = vector.broadcast %c0_i32_5 : i32 to vector<1x256xi32>
    %20 = arith.cmpi eq, %18, %19 : vector<1x256xi32>
    %c15_i32 = arith.constant 15 : i32
    %21 = vector.broadcast %c15_i32 : i32 to vector<1x256xi32>
    %22 = arith.cmpi eq, %18, %21 : vector<1x256xi32>
    %c1_i32_6 = arith.constant 1 : i32
    %23 = tpu.dynamic_rotate %1 by %c1_i32_6 dim 1 : vector<12x256xf32>, i32 -> vector<12x256xf32>
    %c240_i32 = arith.constant 240 : i32
    %24 = tpu.dynamic_rotate %23 by %c240_i32 dim 1 : vector<12x256xf32>, i32 -> vector<12x256xf32>
    %25 = vector.shape_cast %20 : vector<1x256xi1> to vector<1x256xi1>
    %26 = vector.broadcast %25 : vector<1x256xi1> to vector<12x256xi1>
    %27 = arith.select %26, %24, %23 : vector<12x256xi1>, vector<12x256xf32>
    %c255_i32 = arith.constant 255 : i32
    %28 = tpu.dynamic_rotate %1 by %c255_i32 dim 1 : vector<12x256xf32>, i32 -> vector<12x256xf32>
    %c16_i32_7 = arith.constant 16 : i32
    %29 = tpu.dynamic_rotate %28 by %c16_i32_7 dim 1 : vector<12x256xf32>, i32 -> vector<12x256xf32>
    %30 = vector.shape_cast %22 : vector<1x256xi1> to vector<1x256xi1>
    %31 = vector.broadcast %30 : vector<1x256xi1> to vector<12x256xi1>
    %32 = arith.select %31, %29, %28 : vector<12x256xi1>, vector<12x256xf32>
    %c16_i32_8 = arith.constant 16 : i32
    %33 = tpu.dynamic_rotate %27 by %c16_i32_8 dim 1 : vector<12x256xf32>, i32 -> vector<12x256xf32>
    %c16_i32_9 = arith.constant 16 : i32
    %34 = tpu.dynamic_rotate %1 by %c16_i32_9 dim 1 : vector<12x256xf32>, i32 -> vector<12x256xf32>
    %c16_i32_10 = arith.constant 16 : i32
    %35 = tpu.dynamic_rotate %32 by %c16_i32_10 dim 1 : vector<12x256xf32>, i32 -> vector<12x256xf32>
    %c240_i32_11 = arith.constant 240 : i32
    %36 = tpu.dynamic_rotate %27 by %c240_i32_11 dim 1 : vector<12x256xf32>, i32 -> vector<12x256xf32>
    %c240_i32_12 = arith.constant 240 : i32
    %37 = tpu.dynamic_rotate %1 by %c240_i32_12 dim 1 : vector<12x256xf32>, i32 -> vector<12x256xf32>
    %c240_i32_13 = arith.constant 240 : i32
    %38 = tpu.dynamic_rotate %32 by %c240_i32_13 dim 1 : vector<12x256xf32>, i32 -> vector<12x256xf32>
    %39 = tpu.concatenate %33, %34, %35, %27, %1, %32, %36, %37, %38 in 0 : vector<12x256xf32>, vector<12x256xf32>, vector<12x256xf32>, vector<12x256xf32>, vector<12x256xf32>, vector<12x256xf32>, vector<12x256xf32>, vector<12x256xf32>, vector<12x256xf32> -> vector<108x256xf32>
    %c0_14 = arith.constant 0 : index
    %c0_15 = arith.constant 0 : index
    %40 = vector.load %arg3[%c0_14, %c0_15] : memref<96x108xf32, #tpu.memory_space<vmem>>, vector<96x108xf32>
    %cst = arith.constant dense<0.000000e+00> : vector<96x256xf32>
    %41 = tpu.matmul %40, %39, %cst {dimension_numbers = #tpu.dot_dimension_numbers<[1], [0], [0], [1], [0, 0, 1, 1], [], []>} : vector<96x108xf32>, vector<108x256xf32>, vector<96x256xf32> -> vector<96x256xf32>
    %c0_16 = arith.constant 0 : index
    %c0_17 = arith.constant 0 : index
    %42 = vector.load %arg4[%c0_16, %c0_17] : memref<96x1xf32, #tpu.memory_space<vmem>>, vector<96x1xf32>
    %43 = vector.broadcast %42 : vector<96x1xf32> to vector<96x256xf32>
    %44 = arith.addf %41, %43 : vector<96x256xf32>
    %cst_18 = arith.constant 0.000000e+00 : f32
    %45 = vector.broadcast %cst_18 : f32 to vector<96x256xf32>
    %46 = arith.maximumf %44, %45 : vector<96x256xf32>
    %c0_19 = arith.constant 0 : index
    %c0_20 = arith.constant 0 : index
    %47 = vector.load %arg5[%c0_19, %c0_20] : memref<12x96xf32, #tpu.memory_space<vmem>>, vector<12x96xf32>
    %cst_21 = arith.constant dense<0.000000e+00> : vector<12x256xf32>
    %48 = tpu.matmul %47, %46, %cst_21 {dimension_numbers = #tpu.dot_dimension_numbers<[1], [0], [0], [1], [0, 0, 1, 1], [], []>} : vector<12x96xf32>, vector<96x256xf32>, vector<12x256xf32> -> vector<12x256xf32>
    %c0_22 = arith.constant 0 : index
    %c0_23 = arith.constant 0 : index
    %c0_24 = arith.constant 0 : index
    %49 = vector.load %arg2[%c0_22, %c0_23, %c0_24] : memref<1x1x256xf32, #tpu.memory_space<vmem>>, vector<1x1x256xf32>
    %50 = vector.shape_cast %49 : vector<1x1x256xf32> to vector<1x256xf32>
    %51 = vector.broadcast %50 : vector<1x256xf32> to vector<12x256xf32>
    %52 = arith.mulf %48, %51 : vector<12x256xf32>
    %53 = arith.addf %1, %52 : vector<12x256xf32>
    %c0_25 = arith.constant 0 : index
    %c0_26 = arith.constant 0 : index
    %c0_27 = arith.constant 0 : index
    %54 = vector.load %arg6[%c0_25, %c0_26, %c0_27] : memref<1x12x256xf32, #tpu.memory_space<vmem>>, vector<1x12x256xf32>
    %55 = vector.shape_cast %54 : vector<1x12x256xf32> to vector<12x256xf32>
    %56 = vector.shape_cast %53 : vector<12x256xf32> to vector<1x12x256xf32>
    tpu.vector_store %arg6[%c0_25, %c0_26, %c0_27], %56 {strides = array<i32>} : memref<1x12x256xf32, #tpu.memory_space<vmem>>, vector<1x12x256xf32>,
    return
  }
  func.func @transform_0(%arg0: i32) -> (i32, i32, i32) {
    %c0_i32 = arith.constant 0 : i32
    %c0_i32_0 = arith.constant 0 : i32
    %c0_i32_1 = arith.constant 0 : i32
    return %arg0, %c0_i32, %c0_i32_0 : i32, i32, i32
  }
  func.func @transform_1(%arg0: i32) -> (i32, i32, i32) {
    %c0_i32 = arith.constant 0 : i32
    %c0_i32_0 = arith.constant 0 : i32
    %c0_i32_1 = arith.constant 0 : i32
    return %arg0, %c0_i32, %c0_i32_0 : i32, i32, i32
  }
  func.func @transform_2(%arg0: i32) -> (i32, i32) {
    %c0_i32 = arith.constant 0 : i32
    %c0_i32_0 = arith.constant 0 : i32
    %c0_i32_1 = arith.constant 0 : i32
    return %c0_i32, %c0_i32_0 : i32, i32
  }
  func.func @transform_3(%arg0: i32) -> (i32, i32) {
    %c0_i32 = arith.constant 0 : i32
    %c0_i32_0 = arith.constant 0 : i32
    %c0_i32_1 = arith.constant 0 : i32
    return %c0_i32, %c0_i32_0 : i32, i32
  }
  func.func @transform_4(%arg0: i32) -> (i32, i32) {
    %c0_i32 = arith.constant 0 : i32
    %c0_i32_0 = arith.constant 0 : i32
    %c0_i32_1 = arith.constant 0 : i32
    return %c0_i32, %c0_i32_0 : i32, i32
  }
  func.func @transform_5(%arg0: i32) -> (i32, i32, i32) {
    %c0_i32 = arith.constant 0 : i32
    %c0_i32_0 = arith.constant 0 : i32
    %c0_i32_1 = arith.constant 0 : i32
    return %arg0, %c0_i32, %c0_i32_0 : i32, i32, i32
  }
}

</mosaic_0001>

<llo_original>
// kernel: tpu_custom_call.1
$region0: #{tpu_custom_call.1}
  #allocation0 [shape = 'u32[]', space=smem, size = 0x4, offset = 0x4, fixed_abs, tag = 'smem constant byte address 0x4 - core index']
  #allocation1 [shape = 'u32[144,128]{1,0:T(1,128)}', space=vmem, size = 0x12000, scoped, tag = 'internal scratch']
  %s0 = inlined_call_operand.vmem [shape: f32[2,12,256], index: 0, kind: input, shape index: {}]
  %s1 = inlined_call_operand.vmem [shape: f32[2,1,256], index: 1, kind: input, shape index: {}]
  %s2 = inlined_call_operand.vmem [shape: f32[96,108], index: 2, kind: input, shape index: {}]
  %s3 = inlined_call_operand.vmem [shape: f32[96,1], index: 3, kind: input, shape index: {}]
  %s4 = inlined_call_operand.vmem [shape: f32[12,96], index: 4, kind: input, shape index: {}]
  %s5 = inlined_call_operand.vmem [shape: f32[2,12,256], index: 5, kind: output, shape index: {}]
  %s6 = sld [smem:[#allocation0]]
  $region53: #{tpu_custom_call.1} parent=0
    _
  %s8 = ssub.s32 1, %s6
  %s9 = scalar_select 0, %s8, %s6
  loop: start=0, step=1, limit=4
  $region2: #{tpu_custom_call.1} parent=0 // loop_pre_header
    _
  $region3: #{tpu_custom_call.1} parent=0 // loop_header
    %s11 = sphi 0, %s15
    %p12 = scmp.ge.s32.totalorder %s11, 4
    %s21 = sphi 0, %s23
    %s24 = sphi 0, %s21
    %s25 = sphi 0, %s24
    %s41 = sphi 0, %s25
    %s47 = sphi 0, %s49
    %s50 = sphi 0, %s47
    %s51 = sphi 0, %s50
    %s67 = sphi 0, %s51
    %s71 = sphi 0, %s71
    %s73 = sphi 0, %s71
    %s74 = sphi 0, %s73
    %s88 = sphi 0, %s74
    %s92 = sphi 0, %s92
    %s94 = sphi 0, %s92
    %s95 = sphi 0, %s94
    %s109 = sphi 0, %s95
    %s113 = sphi 0, %s113
    %s115 = sphi 0, %s113
    %s116 = sphi 0, %s115
    %s130 = sphi 0, %s116
    %s136 = sphi 0, %s138
    %s139 = sphi 0, %s136
    %s140 = sphi 0, %s139
    %s156 = sphi 0, %s140
  $region4: #{tpu_custom_call.1} parent=0 // loop_header_branch
    %14 = sbr.rel (%p12) target = $region8
  $region5: #{tpu_custom_call.1} parent=0 // loop_body
    %s16 = ssub.s32 %s11, 1
    %s17 = ssub.s32 %s11, 2
    %s18 = sadd.s32 %s11, 1
    %s19 = ssub.s32 %s11, %s18
    %p20 = scmp.eq.s32.totalorder %s19, 0
    %s22 = sadd.s32 %s21, 1
    %s23 = scalar_select %p20, %s21, %s22
    %p26 = pneg %p20
    %p27 = scmp.eq.s32.totalorder %s11, 1
    %p28 = por %p26, %p27
    %p29 = scmp.ne.s32.totalorder %s21, %s24
    %p30 = scmp.eq.s32.totalorder %s11, 0
    %p31 = por %p29, %p30
    %p32 = scmp.ne.s32.totalorder %s21, %s24
    %p33 = scmp.eq.s32.totalorder %s16, 1
    %p34 = por %p32, %p33
    %p35 = scmp.ne.s32.totalorder %s24, %s25
    %p36 = scmp.eq.s32.totalorder %s16, 0
    %p37 = por %p35, %p36
    %p38 = scmp.ne.s32.totalorder %s24, %s25
    %p39 = scmp.eq.s32.totalorder %s17, 1
    %p40 = por %p38, %p39
    %p42 = scmp.ne.s32.totalorder %s25, %s41
    %p43 = scmp.eq.s32.totalorder %s17, 0
    %p44 = por %p42, %p43
    %s45 = ssub.s32 %s11, %s18
    %p46 = scmp.eq.s32.totalorder %s45, 0
    %s48 = sadd.s32 %s47, 1
    %s49 = scalar_select %p46, %s47, %s48
    %p52 = pneg %p46
    %p53 = scmp.eq.s32.totalorder %s11, 1
    %p54 = por %p52, %p53
    %p55 = scmp.ne.s32.totalorder %s47, %s50
    %p56 = scmp.eq.s32.totalorder %s11, 0
    %p57 = por %p55, %p56
    %p58 = scmp.ne.s32.totalorder %s47, %s50
    %p59 = scmp.eq.s32.totalorder %s16, 1
    %p60 = por %p58, %p59
    %p61 = scmp.ne.s32.totalorder %s50, %s51
    %p62 = scmp.eq.s32.totalorder %s16, 0
    %p63 = por %p61, %p62
    %p64 = scmp.ne.s32.totalorder %s50, %s51
    %p65 = scmp.eq.s32.totalorder %s17, 1
    %p66 = por %p64, %p65
    %p68 = scmp.ne.s32.totalorder %s51, %s67
    %p69 = scmp.eq.s32.totalorder %s17, 0
    %p70 = por %p68, %p69
    %s72 = sadd.s32 %s71, 1
    %p75 = scmp.eq.s32.totalorder %s11, 1
    %p76 = scmp.ne.s32.totalorder %s71, %s73
    %p77 = scmp.eq.s32.totalorder %s11, 0
    %p78 = por %p76, %p77
    %p79 = scmp.ne.s32.totalorder %s71, %s73
    %p80 = scmp.eq.s32.totalorder %s16, 1
    %p81 = por %p79, %p80
    %p82 = scmp.ne.s32.totalorder %s73, %s74
    %p83 = scmp.eq.s32.totalorder %s16, 0
    %p84 = por %p82, %p83
    %p85 = scmp.ne.s32.totalorder %s73, %s74
    %p86 = scmp.eq.s32.totalorder %s17, 1
    %p87 = por %p85, %p86
    %p89 = scmp.ne.s32.totalorder %s74, %s88
    %p90 = scmp.eq.s32.totalorder %s17, 0
    %p91 = por %p89, %p90
    %s93 = sadd.s32 %s92, 1
    %p96 = scmp.eq.s32.totalorder %s11, 1
    %p97 = scmp.ne.s32.totalorder %s92, %s94
    %p98 = scmp.eq.s32.totalorder %s11, 0
    %p99 = por %p97, %p98
    %p100 = scmp.ne.s32.totalorder %s92, %s94
    %p101 = scmp.eq.s32.totalorder %s16, 1
    %p102 = por %p100, %p101
    %p103 = scmp.ne.s32.totalorder %s94, %s95
    %p104 = scmp.eq.s32.totalorder %s16, 0
    %p105 = por %p103, %p104
    %p106 = scmp.ne.s32.totalorder %s94, %s95
    %p107 = scmp.eq.s32.totalorder %s17, 1
    %p108 = por %p106, %p107
    %p110 = scmp.ne.s32.totalorder %s95, %s109
    %p111 = scmp.eq.s32.totalorder %s17, 0
    %p112 = por %p110, %p111
    %s114 = sadd.s32 %s113, 1
    %p117 = scmp.eq.s32.totalorder %s11, 1
    %p118 = scmp.ne.s32.totalorder %s113, %s115
    %p119 = scmp.eq.s32.totalorder %s11, 0
    %p120 = por %p118, %p119
    %p121 = scmp.ne.s32.totalorder %s113, %s115
    %p122 = scmp.eq.s32.totalorder %s16, 1
    %p123 = por %p121, %p122
    %p124 = scmp.ne.s32.totalorder %s115, %s116
    %p125 = scmp.eq.s32.totalorder %s16, 0
    %p126 = por %p124, %p125
    %p127 = scmp.ne.s32.totalorder %s115, %s116
    %p128 = scmp.eq.s32.totalorder %s17, 1
    %p129 = por %p127, %p128
    %p131 = scmp.ne.s32.totalorder %s116, %s130
    %p132 = scmp.eq.s32.totalorder %s17, 0
    %p133 = por %p131, %p132
    %s134 = ssub.s32 %s11, %s18
    %p135 = scmp.eq.s32.totalorder %s134, 0
    %s137 = sadd.s32 %s136, 1
    %s138 = scalar_select %p135, %s136, %s137
    %p141 = pneg %p135
    %p142 = scmp.eq.s32.totalorder %s11, 1
    %p143 = por %p141, %p142
    %p144 = scmp.ne.s32.totalorder %s136, %s139
    %p145 = scmp.eq.s32.totalorder %s11, 0
    %p146 = por %p144, %p145
    %p147 = scmp.ne.s32.totalorder %s136, %s139
    %p148 = scmp.eq.s32.totalorder %s16, 1
    %p149 = por %p147, %p148
    %p150 = scmp.ne.s32.totalorder %s139, %s140
    %p151 = scmp.eq.s32.totalorder %s16, 0
    %p152 = por %p150, %p151
    %p153 = scmp.ne.s32.totalorder %s139, %s140
    %p154 = scmp.eq.s32.totalorder %s17, 1
    %p155 = por %p153, %p154
    %p157 = scmp.ne.s32.totalorder %s140, %s156
    %p158 = scmp.eq.s32.totalorder %s17, 0
    %p159 = por %p157, %p158
    %p160 = scmp.le.s32.totalorder 1, %s11
    %p161 = scmp.lt.s32.totalorder %s11, 3
    %p162 = pnand %p160, %p161
    %p163 = pneg %p162
    // Predicated region
    $region9: #{tpu_custom_call.1} parent=5 // pred_check
      _
    $region10: #{tpu_custom_call.1} parent=5 // pred_check_branch
      %165 = sbr.rel (%p162) target = $region12
    $region11: #{tpu_custom_call.1} parent=5 // pred_region
      %s166 = ssub.s32 %s11, 1
      // Predicated region
      $region13: #{tpu_custom_call.1} parent=11 // pred_check
        %p167 = pneg %p84
      $region14: #{tpu_custom_call.1} parent=11 // pred_check_branch
        %169 = sbr.rel (%p167) target = $region16
      $region15: #{tpu_custom_call.1} parent=11 // pred_region
        _
      $region16: #{tpu_custom_call.1} parent=11 // pred_fallthru
        _
      // Predicated region
      $region17: #{tpu_custom_call.1} parent=11 // pred_check
        %p170 = pneg %p105
      $region18: #{tpu_custom_call.1} parent=11 // pred_check_branch
        %172 = sbr.rel (%p170) target = $region20
      $region19: #{tpu_custom_call.1} parent=11 // pred_region
        _
      $region20: #{tpu_custom_call.1} parent=11 // pred_fallthru
        _
      // Predicated region
      $region21: #{tpu_custom_call.1} parent=11 // pred_check
        %p173 = pneg %p126
      $region22: #{tpu_custom_call.1} parent=11 // pred_check_branch
        %175 = sbr.rel (%p173) target = $region24
      $region23: #{tpu_custom_call.1} parent=11 // pred_region
        _
      $region24: #{tpu_custom_call.1} parent=11 // pred_fallthru
        _
    $region12: #{tpu_custom_call.1} parent=5 // pred_fallthru
      _
    %p176 = scmp.lt.s32.totalorder %s11, 2
    // Predicated region
    $region25: #{tpu_custom_call.1} parent=5 // pred_check
      %p177 = pneg %p176
    $region26: #{tpu_custom_call.1} parent=5 // pred_check_branch
      %179 = sbr.rel (%p177) target = $region28
    $region27: #{tpu_custom_call.1} parent=5 // pred_region
      // Predicated region
      $region29: #{tpu_custom_call.1} parent=27 // pred_check
        %p180 = pneg %p31
      $region30: #{tpu_custom_call.1} parent=27 // pred_check_branch
        %182 = sbr.rel (%p180) target = $region32
      $region31: #{tpu_custom_call.1} parent=27 // pred_region
        %p183 = scmp.lt.s32.totalorder %s11, 1
        %s184 = scalar_select %p183, %s11, 1
        %s185 = smul.addr %s184, 4
        %s186 = smul.addr %s185, 8
        %s187 = scalar_lea.vmem %s0, %s186
      $region32: #{tpu_custom_call.1} parent=27 // pred_fallthru
        _
      // Predicated region
      $region33: #{tpu_custom_call.1} parent=27 // pred_check
        %p188 = pneg %p57
      $region34: #{tpu_custom_call.1} parent=27 // pred_check_branch
        %190 = sbr.rel (%p188) target = $region36
      $region35: #{tpu_custom_call.1} parent=27 // pred_region
        %p191 = scmp.lt.s32.totalorder %s11, 1
        %s192 = scalar_select %p191, %s11, 1
        %s193 = smul.addr %s192, 2
        %s194 = scalar_lea.vmem %s1, %s193
      $region36: #{tpu_custom_call.1} parent=27 // pred_fallthru
        _
    $region28: #{tpu_custom_call.1} parent=5 // pred_fallthru
      _
    %p195 = scmp.le.s32.totalorder 1, %s11
    %p196 = scmp.lt.s32.totalorder %s11, 3
    %p197 = pnand %p195, %p196
    %p198 = pneg %p197
    // Predicated region
    $region37: #{tpu_custom_call.1} parent=5 // pred_check
      _
    $region38: #{tpu_custom_call.1} parent=5 // pred_check_branch
      %200 = sbr.rel (%p197) target = $region40
    $region39: #{tpu_custom_call.1} parent=5 // pred_region
      %s201 = ssub.s32 %s11, 1
      %p202 = scmp.lt.s32.totalorder %s16, 1
      %s203 = scalar_select %p202, %s16, 1
      %s204 = smul.addr %s203, 4
      %s205 = smul.addr %s204, 8
      %s206 = scalar_lea.vmem %s0, %s205
      %p207 = pneg %p37
      %p208 = pneg %p34
      %p209 = scmp.lt.s32.totalorder %s16, 1
      %s210 = scalar_select %p209, %s16, 1
      %s211 = smul.addr %s210, 2
      %s212 = scalar_lea.vmem %s1, %s211
      %p213 = pneg %p63
      %p214 = pneg %p60
      %p215 = pneg %p84
      %p216 = pneg %p81
      %p217 = pneg %p105
      %p218 = pneg %p102
      %p219 = pneg %p126
      %p220 = pneg %p123
      %p221 = pneg %p152
      %p222 = pneg %p149
      %p223 = scmp.lt.s32.totalorder %s16, 1
      %s224 = scalar_select %p223, %s16, 1
      %s225 = smul.addr %s224, 4
      %s226 = smul.addr %s225, 8
      %s227 = scalar_lea.vmem %s5, %s226
      %p228 = scmp.lt.s32.totalorder %s16, 1
      %s229 = scalar_select %p228, %s16, 1
      %s230 = smul.addr %s229, 4
      %s231 = smul.addr %s230, 8
      %s232 = scalar_lea.vmem %s0, %s231
      %p233 = scmp.lt.s32.totalorder %s16, 1
      %s234 = scalar_select %p233, %s16, 1
      %s235 = smul.addr %s234, 2
      %s236 = scalar_lea.vmem %s1, %s235
      %p237 = scmp.lt.s32.totalorder %s16, 1
      %s238 = scalar_select %p237, %s16, 1
      %s239 = smul.addr %s238, 4
      %s240 = smul.addr %s239, 8
      %s241 = scalar_lea.vmem %s5, %s240
      %v242 = vld [vmem:[%s232] sm:$0xff]
      %v243 = vld [vmem:[%s232 + $0x8] sm:$0xff]
      %v244 = vld [vmem:[%s232 + $0x10] sm:$0xf]
      %v245 = vld [vmem:[%s232 + $0x18] sm:$0xf]
      %v246 = vlaneseq
      %v247 = vand.u32 %v246, 127
      %v248 = vadd.s32 %v247, 128
      %vm249 = vcmp.lt.s32.totalorder %v247, 0
      %v250 = vsub.s32 0, %v247
      %v251 = vsel %vm249, %v250, %v247
      %v252 = vshrl.u32 %v251, 4
      %v253 = vand.u32 %v251, 15
      %v254 = vsub.s32 0, %v253
      %v255 = vsel %vm249, %v254, %v253
      %vm256 = vcmp.lt.s32.totalorder %v248, 0
      %v257 = vsub.s32 0, %v248
      %v258 = vsel %vm256, %v257, %v248
      %v259 = vshrl.u32 %v258, 4
      %v260 = vand.u32 %v258, 15
      %v261 = vsub.s32 0, %v260
      %v262 = vsel %vm256, %v261, %v260
      %vm263 = vcmp.ne.s32.totalorder %v255, 0
      %vm264 = vcmp.ne.s32.totalorder %v262, 0
      %vm265 = vcmp.lt.s32.totalorder %v255, 0
      %vm266 = vcmp.lt.s32.totalorder %v262, 0
      %vm267 = vmand %vm265, %vm263
      %vm268 = vmand %vm266, %vm264
      %v269 = vadd.s32 %v255, 16
      %v270 = vadd.s32 %v262, 16
      %v271 = vsel %vm267, %v269, %v255
      %v272 = vsel %vm268, %v270, %v262
      %vm273 = vcmp.eq.s32.totalorder %v271, 0
      %vm274 = vcmp.eq.s32.totalorder %v272, 0
      %vm275 = vcmp.eq.s32.totalorder %v271, 15
      %vm276 = vcmp.eq.s32.totalorder %v272, 15
      %277 = vrot.lane.b32.xlu0 %v242, 1
      %v278 = vpop.permute.xlu0 %277
      %279 = vrot.lane.b32.xlu0 %v244, 1
      %v280 = vpop.permute.xlu0 %279
      %281 = vrot.lane.b32.xlu0 %v243, 1
      %v282 = vpop.permute.xlu0 %281
      %283 = vrot.lane.b32.xlu0 %v245, 1
      %v284 = vpop.permute.xlu0 %283
      %vm285 = vcmp.lt.s32.totalorder %v247, 1
      %v286 = vsel %vm285, %v278, %v282
      %v287 = vsel %vm285, %v280, %v284
      %v288 = vsel %vm285, %v282, %v278
      %v289 = vsel %vm285, %v284, %v280
      %290 = vrot.lane.b32.xlu0 %v288, 112
      %v291 = vpop.permute.xlu0 %290
      %292 = vrot.lane.b32.xlu0 %v289, 112
      %v293 = vpop.permute.xlu0 %292
      %294 = vrot.lane.b32.xlu0 %v286, 112
      %v295 = vpop.permute.xlu0 %294
      %296 = vrot.lane.b32.xlu0 %v287, 112
      %v297 = vpop.permute.xlu0 %296
      %vm298 = vcmp.lt.s32.totalorder %v247, 112
      %v299 = vsel %vm298, %v291, %v295
      %v300 = vsel %vm298, %v293, %v297
      %v301 = vsel %vm298, %v295, %v291
      %v302 = vsel %vm298, %v297, %v293
      %v303 = vsel %vm273, 1, 0
      %v304 = vsel %vm274, 1, 0
      %vm305 = vcmp.eq.s32.totalorder %v303, 1
      %vm306 = vcmp.eq.s32.totalorder %v304, 1
      %v307 = vsel %vm305, %v299, %v288
      %v308 = vsel %vm306, %v301, %v286
      %v309 = vsel %vm305, %v300, %v289
      %v310 = vsel %vm306, %v302, %v287
      %311 = vrot.lane.b32.xlu0 %v242, 127
      %v312 = vpop.permute.xlu0 %311
      %313 = vrot.lane.b32.xlu0 %v244, 127
      %v314 = vpop.permute.xlu0 %313
      %315 = vrot.lane.b32.xlu0 %v243, 127
      %v316 = vpop.permute.xlu0 %315
      %317 = vrot.lane.b32.xlu0 %v245, 127
      %v318 = vpop.permute.xlu0 %317
      %vm319 = vcmp.lt.s32.totalorder %v247, 127
      %v320 = vsel %vm319, %v312, %v316
      %v321 = vsel %vm319, %v314, %v318
      %v322 = vsel %vm319, %v316, %v312
      %v323 = vsel %vm319, %v318, %v314
      %324 = vrot.lane.b32.xlu0 %v320, 16
      %v325 = vpop.permute.xlu0 %324
      %326 = vrot.lane.b32.xlu0 %v321, 16
      %v327 = vpop.permute.xlu0 %326
      %328 = vrot.lane.b32.xlu0 %v322, 16
      %v329 = vpop.permute.xlu0 %328
      %330 = vrot.lane.b32.xlu0 %v323, 16
      %v331 = vpop.permute.xlu0 %330
      %vm332 = vcmp.lt.s32.totalorder %v247, 16
      %v333 = vsel %vm332, %v325, %v329
      %v334 = vsel %vm332, %v327, %v331
      %v335 = vsel %vm332, %v329, %v325
      %v336 = vsel %vm332, %v331, %v327
      %v337 = vsel %vm275, 1, 0
      %v338 = vsel %vm276, 1, 0
      %vm339 = vcmp.eq.s32.totalorder %v337, 1
      %vm340 = vcmp.eq.s32.totalorder %v338, 1
      %v341 = vsel %vm339, %v335, %v320
      %v342 = vsel %vm340, %v333, %v322
      %v343 = vsel %vm339, %v336, %v321
      %v344 = vsel %vm340, %v334, %v323
      %345 = vrot.lane.b32.xlu0 %v307, 16
      %v346 = vpop.permute.xlu0 %345
      %347 = vrot.lane.b32.xlu0 %v309, 16
      %v348 = vpop.permute.xlu0 %347
      %349 = vrot.lane.b32.xlu0 %v308, 16
      %v350 = vpop.permute.xlu0 %349
      %351 = vrot.lane.b32.xlu0 %v310, 16
      %v352 = vpop.permute.xlu0 %351
      %v353 = vsel %vm332, %v346, %v350
      %v354 = vsel %vm332, %v348, %v352
      %v355 = vsel %vm332, %v350, %v346
      %v356 = vsel %vm332, %v352, %v348
      %357 = vrot.lane.b32.xlu0 %v242, 16
      %v358 = vpop.permute.xlu0 %357
      %359 = vrot.lane.b32.xlu0 %v244, 16
      %v360 = vpop.permute.xlu0 %359
      %361 = vrot.lane.b32.xlu0 %v243, 16
      %v362 = vpop.permute.xlu0 %361
      %363 = vrot.lane.b32.xlu0 %v245, 16
      %v364 = vpop.permute.xlu0 %363
      %v365 = vsel %vm332, %v358, %v362
      %v366 = vsel %vm332, %v360, %v364
      %v367 = vsel %vm332, %v362, %v358
      %v368 = vsel %vm332, %v364, %v360
      %369 = vrot.lane.b32.xlu0 %v341, 16
      %v370 = vpop.permute.xlu0 %369
      %371 = vrot.lane.b32.xlu0 %v343, 16
      %v372 = vpop.permute.xlu0 %371
      %373 = vrot.lane.b32.xlu0 %v342, 16
      %v374 = vpop.permute.xlu0 %373
      %375 = vrot.lane.b32.xlu0 %v344, 16
      %v376 = vpop.permute.xlu0 %375
      %v377 = vsel %vm332, %v370, %v374
      %v378 = vsel %vm332, %v372, %v376
      %v379 = vsel %vm332, %v374, %v370
      %v380 = vsel %vm332, %v376, %v372
      %381 = vrot.lane.b32.xlu0 %v307, 112
      %v382 = vpop.permute.xlu0 %381
      %383 = vrot.lane.b32.xlu0 %v309, 112
      %v384 = vpop.permute.xlu0 %383
      %385 = vrot.lane.b32.xlu0 %v308, 112
      %v386 = vpop.permute.xlu0 %385
      %387 = vrot.lane.b32.xlu0 %v310, 112
      %v388 = vpop.permute.xlu0 %387
      %v389 = vsel %vm298, %v382, %v386
      %v390 = vsel %vm298, %v384, %v388
      %v391 = vsel %vm298, %v386, %v382
      %v392 = vsel %vm298, %v388, %v384
      %393 = vrot.lane.b32.xlu0 %v242, 112
      %v394 = vpop.permute.xlu0 %393
      %395 = vrot.lane.b32.xlu0 %v244, 112
      %v396 = vpop.permute.xlu0 %395
      %397 = vrot.lane.b32.xlu0 %v243, 112
      %v398 = vpop.permute.xlu0 %397
      %399 = vrot.lane.b32.xlu0 %v245, 112
      %v400 = vpop.permute.xlu0 %399
      %v401 = vsel %vm298, %v394, %v398
      %v402 = vsel %vm298, %v396, %v400
      %v403 = vsel %vm298, %v398, %v394
      %v404 = vsel %vm298, %v400, %v396
      %405 = vrot.lane.b32.xlu0 %v341, 112
      %v406 = vpop.permute.xlu0 %405
      %407 = vrot.lane.b32.xlu0 %v343, 112
      %v408 = vpop.permute.xlu0 %407
      %409 = vrot.lane.b32.xlu0 %v342, 112
      %v410 = vpop.permute.xlu0 %409
      %411 = vrot.lane.b32.xlu0 %v344, 112
      %v412 = vpop.permute.xlu0 %411
      %v413 = vsel %vm298, %v406, %v410
      %v414 = vsel %vm298, %v408, %v412
      %v415 = vsel %vm298, %v410, %v406
      %v416 = vsel %vm298, %v412, %v408
      %vm421 = vcmask 1043456
      %v422 = vrot.slane %v367, 4
      %v423 = vrot.slane %v365, 4
      %v424 = vrot.slane %v368, 4
      %v425 = vsel %vm421, %v422, %v424
      %v426 = vrot.slane %v366, 4
      %v427 = vsel %vm421, %v423, %v426
      %v436 = vrot.slane %v307, 4
      %v437 = vrot.slane %v308, 4
      %v438 = vrot.slane %v309, 4
      %v439 = vsel %vm421, %v436, %v438
      %v440 = vrot.slane %v310, 4
      %v441 = vsel %vm421, %v437, %v440
      %v450 = vrot.slane %v341, 4
      %v451 = vrot.slane %v342, 4
      %v452 = vrot.slane %v343, 4
      %v453 = vsel %vm421, %v450, %v452
      %v454 = vrot.slane %v344, 4
      %v455 = vsel %vm421, %v451, %v454
      %v464 = vrot.slane %v401, 4
      %v465 = vrot.slane %v403, 4
      %v466 = vrot.slane %v402, 4
      %v467 = vsel %vm421, %v464, %v466
      %v468 = vrot.slane %v404, 4
      %v469 = vsel %vm421, %v465, %v468
      %v474 = vsel %vm421, %v356, %v422
      %v475 = vsel %vm421, %v354, %v423
      %v476 = vsel %vm421, %v380, %v436
      %v477 = vsel %vm421, %v378, %v437
      %v478 = vsel %vm421, %v244, %v450
      %v479 = vsel %vm421, %v245, %v451
      %v480 = vsel %vm421, %v390, %v464
      %v481 = vsel %vm421, %v392, %v465
      %v482 = vld [vmem:[%s2] sm:$0xff]
      %v483 = vld [vmem:[%s2 + $0x8] sm:$0xff]
      %v484 = vld [vmem:[%s2 + $0x10] sm:$0xff]
      %v485 = vld [vmem:[%s2 + $0x18] sm:$0xff]
      %v486 = vld [vmem:[%s2 + $0x20] sm:$0xff]
      %v487 = vld [vmem:[%s2 + $0x28] sm:$0xff]
      %v488 = vld [vmem:[%s2 + $0x30] sm:$0xff]
      %v489 = vld [vmem:[%s2 + $0x38] sm:$0xff]
      %v490 = vld [vmem:[%s2 + $0x40] sm:$0xff]
      %v491 = vld [vmem:[%s2 + $0x48] sm:$0xff]
      %v492 = vld [vmem:[%s2 + $0x50] sm:$0xff]
      %v493 = vld [vmem:[%s2 + $0x58] sm:$0xff]
      %v494 = vld [vmem:[%s3] sm:$0xff]
      %v495 = vld [vmem:[%s3 + $0x8] sm:$0xff]
      %v496 = vld [vmem:[%s3 + $0x10] sm:$0xff]
      %v497 = vld [vmem:[%s3 + $0x18] sm:$0xff]
      %v498 = vld [vmem:[%s3 + $0x20] sm:$0xff]
      %v499 = vld [vmem:[%s3 + $0x28] sm:$0xff]
      %v500 = vld [vmem:[%s3 + $0x30] sm:$0xff]
      %v501 = vld [vmem:[%s3 + $0x38] sm:$0xff]
      %v502 = vld [vmem:[%s3 + $0x40] sm:$0xff]
      %v503 = vld [vmem:[%s3 + $0x48] sm:$0xff]
      %v504 = vld [vmem:[%s3 + $0x50] sm:$0xff]
      %v505 = vld [vmem:[%s3 + $0x58] sm:$0xff]
      %507 = vset.pattern.permute.xlu0 0
      %508 = vperm.xlu0 %507, %v494
      %v509 = vpop.permute.xlu0 %508
      %512 = vset.pattern.permute.xlu0 0
      %513 = vperm.xlu0 %512, %v495
      %v514 = vpop.permute.xlu0 %513
      %517 = vset.pattern.permute.xlu0 0
      %518 = vperm.xlu0 %517, %v496
      %v519 = vpop.permute.xlu0 %518
      %522 = vset.pattern.permute.xlu0 0
      %523 = vperm.xlu0 %522, %v497
      %v524 = vpop.permute.xlu0 %523
      %527 = vset.pattern.permute.xlu0 0
      %528 = vperm.xlu0 %527, %v498
      %v529 = vpop.permute.xlu0 %528
      %532 = vset.pattern.permute.xlu0 0
      %533 = vperm.xlu0 %532, %v499
      %v534 = vpop.permute.xlu0 %533
      %537 = vset.pattern.permute.xlu0 0
      %538 = vperm.xlu0 %537, %v500
      %v539 = vpop.permute.xlu0 %538
      %542 = vset.pattern.permute.xlu0 0
      %543 = vperm.xlu0 %542, %v501
      %v544 = vpop.permute.xlu0 %543
      %547 = vset.pattern.permute.xlu0 0
      %548 = vperm.xlu0 %547, %v502
      %v549 = vpop.permute.xlu0 %548
      %552 = vset.pattern.permute.xlu0 0
      %553 = vperm.xlu0 %552, %v503
      %v554 = vpop.permute.xlu0 %553
      %557 = vset.pattern.permute.xlu0 0
      %558 = vperm.xlu0 %557, %v504
      %v559 = vpop.permute.xlu0 %558
      %562 = vset.pattern.permute.xlu0 0
      %563 = vperm.xlu0 %562, %v505
      %v564 = vpop.permute.xlu0 %563
      %vm566 = vcmask 883712
      %v568 = vsel %vm566, %v482, 0
      %v571 = vsel %vm566, %v483, 0
      %v574 = vsel %vm566, %v484, 0
      %v577 = vsel %vm566, %v485, 0
      %v580 = vsel %vm566, %v486, 0
      %v583 = vsel %vm566, %v487, 0
      %v586 = vsel %vm566, %v488, 0
      %v589 = vsel %vm566, %v489, 0
      %v592 = vsel %vm566, %v490, 0
      %v595 = vsel %vm566, %v491, 0
      %v598 = vsel %vm566, %v492, 0
      %v601 = vsel %vm566, %v493, 0
      %v604 = vsel %vm421, %v414, 0
      %v607 = vsel %vm421, %v416, 0
      %609 = vmatprep.subr.mxu0 0.0
      %610 = vmatpush1.msra.mxu0 0.0
      %611 = vmatprep.subr.mxu0 0.0
      %612 = vmatpush1.msra.mxu0 0.0
      %613 = vmatprep.subr.mxu0 %v607
      %614 = vmatpush1.msra.mxu0 %v604
      %615 = vmatprep.subr.mxu0 %v415
      %616 = vmatpush1.msra.mxu0 %v413
      %617 = vmatprep.subr.mxu0 %v469
      %618 = vmatpush1.msra.mxu0 %v467
      %619 = vmatprep.subr.mxu0 %v481
      %620 = vmatpush1.msra.mxu0 %v480
      %621 = vmatprep.subr.mxu0 %v391
      %622 = vmatpush1.msra.mxu0 %v389
      %623 = vmatprep.subr.mxu0 %v455
      %624 = vmatpush1.msra.mxu0 %v453
      %625 = vmatprep.subr.mxu0 %v479
      %626 = vmatpush1.msra.mxu0 %v478
      %627 = vmatprep.subr.mxu0 %v243
      %628 = vmatpush1.msra.mxu0 %v242
      %629 = vmatprep.subr.mxu0 %v441
      %630 = vmatpush1.msra.mxu0 %v439
      %631 = vmatprep.subr.mxu0 %v477
      %632 = vmatpush1.msra.mxu0 %v476
      %633 = vmatprep.subr.mxu0 %v377
      %634 = vmatpush1.msra.mxu0 %v379
      %635 = vmatprep.subr.mxu0 %v427
      %636 = vmatpush1.msra.mxu0 %v425
      %637 = vmatprep.subr.mxu0 %v475
      %638 = vmatpush1.msra.mxu0 %v474
      %639 = vmatprep.subr.mxu0 %v353
      %640 = vmatpush1.msra.mxu0 %v355
      %641 = vmatprep.subr.mxu0 0.0
      %642 = vmatpush2.msra.mxu0 0.0
      %643 = vmatprep.subr.mxu0 0.0
      %644 = vmatpush2.msra.mxu0 0.0
      %645 = vmatprep.subr.mxu0 0.0
      %646 = vmatpush2.msra.mxu0 0.0
      %647 = vmatprep.subr.mxu0 0.0
      %648 = vmatpush2.msra.mxu0 0.0
      %649 = vmatprep.subr.mxu0 0.0
      %650 = vmatpush2.msra.mxu0 0.0
      %651 = vmatprep.subr.mxu0 0.0
      %652 = vmatpush2.msra.mxu0 0.0
      %653 = vmatprep.subr.mxu0 0.0
      %654 = vmatpush2.msra.mxu0 0.0
      %655 = vmatprep.subr.mxu0 0.0
      %656 = vmatpush2.msra.mxu0 0.0
      %657 = vmatprep.subr.mxu0 0.0
      %658 = vmatpush2.msra.mxu0 0.0
      %659 = vmatprep.subr.mxu0 0.0
      %660 = vmatpush2.msra.mxu0 0.0
      %661 = vmatprep.subr.mxu0 0.0
      %662 = vmatpush2.msra.mxu0 0.0
      %663 = vmatprep.subr.mxu0 0.0
      %664 = vmatpush2.msra.mxu0 0.0
      %665 = vmatprep.subr.mxu0 0.0
      %666 = vmatpush2.msra.mxu0 0.0
      %667 = vmatprep.subr.mxu0 0.0
      %668 = vmatpush2.msra.mxu0 0.0
      %669 = vmatprep.subr.mxu0 0.0
      %670 = vmatpush2.msra.mxu0 0.0
      %671 = vmatprep.subr.mxu0 0.0
      %672 = vmatpush2.msra.mxu0 0.0
      %673 = vmatprep.mubr.f32.mxu0 0.0
      %674 = vmatmul.mubr.f32.gmra.mxu0 %v568
      %v675 = vpop.f32.mrf.mxu0
      %v676 = vadd.f32 %v509, %v675
      %v677 = vpop.f32.mrf.mxu0
      %v678 = vadd.f32 %v509, %v677
      %679 = vmatprep.mubr.f32.mxu0 0.0
      %680 = vmatmul.mubr.f32.gmra.mxu0 %v571
      %v681 = vpop.f32.mrf.mxu0
      %v682 = vadd.f32 %v514, %v681
      %v683 = vpop.f32.mrf.mxu0
      %v684 = vadd.f32 %v514, %v683
      %685 = vmatprep.mubr.f32.mxu0 0.0
      %686 = vmatmul.mubr.f32.gmra.mxu0 %v574
      %v687 = vpop.f32.mrf.mxu0
      %v688 = vadd.f32 %v519, %v687
      %v689 = vpop.f32.mrf.mxu0
      %v690 = vadd.f32 %v519, %v689
      %691 = vmatprep.mubr.f32.mxu0 0.0
      %692 = vmatmul.mubr.f32.gmra.mxu0 %v577
      %v693 = vpop.f32.mrf.mxu0
      %v694 = vadd.f32 %v524, %v693
      %v695 = vpop.f32.mrf.mxu0
      %v696 = vadd.f32 %v524, %v695
      %697 = vmatprep.mubr.f32.mxu0 0.0
      %698 = vmatmul.mubr.f32.gmra.mxu0 %v580
      %v699 = vpop.f32.mrf.mxu0
      %v700 = vadd.f32 %v529, %v699
      %v701 = vpop.f32.mrf.mxu0
      %v702 = vadd.f32 %v529, %v701
      %703 = vmatprep.mubr.f32.mxu0 0.0
      %704 = vmatmul.mubr.f32.gmra.mxu0 %v583
      %v705 = vpop.f32.mrf.mxu0
      %v706 = vadd.f32 %v534, %v705
      %v707 = vpop.f32.mrf.mxu0
      %v708 = vadd.f32 %v534, %v707
      %709 = vmatprep.mubr.f32.mxu0 0.0
      %710 = vmatmul.mubr.f32.gmra.mxu0 %v586
      %v711 = vpop.f32.mrf.mxu0
      %v712 = vadd.f32 %v539, %v711
      %v713 = vpop.f32.mrf.mxu0
      %v714 = vadd.f32 %v539, %v713
      %715 = vmatprep.mubr.f32.mxu0 0.0
      %716 = vmatmul.mubr.f32.gmra.mxu0 %v589
      %v717 = vpop.f32.mrf.mxu0
      %v718 = vadd.f32 %v544, %v717
      %v719 = vpop.f32.mrf.mxu0
      %v720 = vadd.f32 %v544, %v719
      %721 = vmatprep.mubr.f32.mxu0 0.0
      %722 = vmatmul.mubr.f32.gmra.mxu0 %v592
      %v723 = vpop.f32.mrf.mxu0
      %v724 = vadd.f32 %v549, %v723
      %v725 = vpop.f32.mrf.mxu0
      %v726 = vadd.f32 %v549, %v725
      %727 = vmatprep.mubr.f32.mxu0 0.0
      %728 = vmatmul.mubr.f32.gmra.mxu0 %v595
      %v729 = vpop.f32.mrf.mxu0
      %v730 = vadd.f32 %v554, %v729
      %v731 = vpop.f32.mrf.mxu0
      %v732 = vadd.f32 %v554, %v731
      %733 = vmatprep.mubr.f32.mxu0 0.0
      %734 = vmatmul.mubr.f32.gmra.mxu0 %v598
      %v735 = vpop.f32.mrf.mxu0
      %v736 = vadd.f32 %v559, %v735
      %v737 = vpop.f32.mrf.mxu0
      %v738 = vadd.f32 %v559, %v737
      %739 = vmatprep.mubr.f32.mxu0 0.0
      %740 = vmatmul.mubr.f32.gmra.mxu0 %v601
      %v741 = vpop.f32.mrf.mxu0
      %v742 = vadd.f32 %v564, %v741
      %v743 = vpop.f32.mrf.mxu0
      %v744 = vadd.f32 %v564, %v743
      %745 = vdwg.mxu0
      %v746 = vmax.f32 %v676, 0.0
      %v747 = vmax.f32 %v678, 0.0
      %v748 = vmax.f32 %v682, 0.0
      %v749 = vmax.f32 %v684, 0.0
      %v750 = vmax.f32 %v688, 0.0
      %v751 = vmax.f32 %v690, 0.0
      %v752 = vmax.f32 %v694, 0.0
      %v753 = vmax.f32 %v696, 0.0
      %v754 = vmax.f32 %v700, 0.0
      %v755 = vmax.f32 %v702, 0.0
      %v756 = vmax.f32 %v706, 0.0
      %v757 = vmax.f32 %v708, 0.0
      %v758 = vmax.f32 %v712, 0.0
      %v759 = vmax.f32 %v714, 0.0
      %v760 = vmax.f32 %v718, 0.0
      %v761 = vmax.f32 %v720, 0.0
      %v762 = vmax.f32 %v724, 0.0
      %v763 = vmax.f32 %v726, 0.0
      %v764 = vmax.f32 %v730, 0.0
      %v765 = vmax.f32 %v732, 0.0
      %v766 = vmax.f32 %v736, 0.0
      %v767 = vmax.f32 %v738, 0.0
      %v768 = vmax.f32 %v742, 0.0
      %v769 = vmax.f32 %v744, 0.0
      %v770 = vld [vmem:[%s4] sm:$0xff]
      %v771 = vld [vmem:[%s4 + $0x8] sm:$0xf]
      %vm772 = vcmask 785408
      %v774 = vsel %vm772, %v770, 0
      %v777 = vsel %vm772, %v771, 0
      %779 = vmatprep.subr.mxu0 0.0
      %780 = vmatpush1.msra.mxu0 0.0
      %781 = vmatprep.subr.mxu0 0.0
      %782 = vmatpush1.msra.mxu0 0.0
      %783 = vmatprep.subr.mxu0 0.0
      %784 = vmatpush1.msra.mxu0 0.0
      %785 = vmatprep.subr.mxu0 0.0
      %786 = vmatpush1.msra.mxu0 0.0
      %787 = vmatprep.subr.mxu0 %v769
      %788 = vmatpush1.msra.mxu0 %v768
      %789 = vmatprep.subr.mxu0 %v767
      %790 = vmatpush1.msra.mxu0 %v766
      %791 = vmatprep.subr.mxu0 %v765
      %792 = vmatpush1.msra.mxu0 %v764
      %793 = vmatprep.subr.mxu0 %v763
      %794 = vmatpush1.msra.mxu0 %v762
      %795 = vmatprep.subr.mxu0 %v761
      %796 = vmatpush1.msra.mxu0 %v760
      %797 = vmatprep.subr.mxu0 %v759
      %798 = vmatpush1.msra.mxu0 %v758
      %799 = vmatprep.subr.mxu0 %v757
      %800 = vmatpush1.msra.mxu0 %v756
      %801 = vmatprep.subr.mxu0 %v755
      %802 = vmatpush1.msra.mxu0 %v754
      %803 = vmatprep.subr.mxu0 %v753
      %804 = vmatpush1.msra.mxu0 %v752
      %805 = vmatprep.subr.mxu0 %v751
      %806 = vmatpush1.msra.mxu0 %v750
      %807 = vmatprep.subr.mxu0 %v749
      %808 = vmatpush1.msra.mxu0 %v748
      %809 = vmatprep.subr.mxu0 %v747
      %810 = vmatpush1.msra.mxu0 %v746
      %811 = vmatprep.subr.mxu0 0.0
      %812 = vmatpush2.msra.mxu0 0.0
      %813 = vmatprep.subr.mxu0 0.0
      %814 = vmatpush2.msra.mxu0 0.0
      %815 = vmatprep.subr.mxu0 0.0
      %816 = vmatpush2.msra.mxu0 0.0
      %817 = vmatprep.subr.mxu0 0.0
      %818 = vmatpush2.msra.mxu0 0.0
      %819 = vmatprep.subr.mxu0 0.0
      %820 = vmatpush2.msra.mxu0 0.0
      %821 = vmatprep.subr.mxu0 0.0
      %822 = vmatpush2.msra.mxu0 0.0
      %823 = vmatprep.subr.mxu0 0.0
      %824 = vmatpush2.msra.mxu0 0.0
      %825 = vmatprep.subr.mxu0 0.0
      %826 = vmatpush2.msra.mxu0 0.0
      %827 = vmatprep.subr.mxu0 0.0
      %828 = vmatpush2.msra.mxu0 0.0
      %829 = vmatprep.subr.mxu0 0.0
      %830 = vmatpush2.msra.mxu0 0.0
      %831 = vmatprep.subr.mxu0 0.0
      %832 = vmatpush2.msra.mxu0 0.0
      %833 = vmatprep.subr.mxu0 0.0
      %834 = vmatpush2.msra.mxu0 0.0
      %835 = vmatprep.subr.mxu0 0.0
      %836 = vmatpush2.msra.mxu0 0.0
      %837 = vmatprep.subr.mxu0 0.0
      %838 = vmatpush2.msra.mxu0 0.0
      %839 = vmatprep.subr.mxu0 0.0
      %840 = vmatpush2.msra.mxu0 0.0
      %841 = vmatprep.subr.mxu0 0.0
      %842 = vmatpush2.msra.mxu0 0.0
      %843 = vmatprep.mubr.f32.mxu0 0.0
      %844 = vmatmul.mubr.f32.gmra.mxu0 %v774
      %v845 = vpop.f32.mrf.mxu0
      %v846 = vadd.f32 0.0, %v845
      %v847 = vpop.f32.mrf.mxu0
      %v848 = vadd.f32 0.0, %v847
      %849 = vmatprep.mubr.f32.mxu0 0.0
      %850 = vmatmul.mubr.f32.gmra.mxu0 %v777
      %v851 = vpop.f32.mrf.mxu0
      %v852 = vadd.f32 0.0, %v851
      %v853 = vpop.f32.mrf.mxu0
      %v854 = vadd.f32 0.0, %v853
      %855 = vdwg.mxu0
      %v856 = vld [vmem:[%s236] sm:$0x3]
      %v858 = vlaneseq
      %v859 = vshrl.u32 %v858, 7
      %v860 = vsub.s32 0, %v859
      %v861 = vrot.slane %v856, %v860
      %v862 = vlaneseq
      %v863 = vshrl.u32 %v862, 7
      %v864 = vsub.s32 1, %v863
      %v865 = vrot.slane %v856, %v864
      %v868 = vmul.f32 %v846, %v861
      %v869 = vmul.f32 %v848, %v865
      %v870 = vmul.f32 %v852, %v861
      %v871 = vmul.f32 %v854, %v865
      %v872 = vadd.f32 %v242, %v868
      %v873 = vadd.f32 %v243, %v869
      %v874 = vadd.f32 %v244, %v870
      %v875 = vadd.f32 %v245, %v871
      %876 = vst [vmem:[%s241] sm:$0xff] %v872
      %877 = vst [vmem:[%s241 + $0x8] sm:$0xff] %v873
      %878 = vst [vmem:[%s241 + $0x10] sm:$0xf] %v874
      %879 = vst [vmem:[%s241 + $0x18] sm:$0xf] %v875
      %p880 = scmp.lt.s32.totalorder %s16, 1
      %s881 = scalar_select %p880, %s16, 1
      %s882 = smul.addr %s881, 4
      %s883 = smul.addr %s882, 8
      %s884 = scalar_lea.vmem %s5, %s883
      // Predicated region
      $region41: #{tpu_custom_call.1} parent=39 // pred_check
        %p885 = pneg %p149
      $region42: #{tpu_custom_call.1} parent=39 // pred_check_branch
        %887 = sbr.rel (%p885) target = $region44
      $region43: #{tpu_custom_call.1} parent=39 // pred_region
        _
      $region44: #{tpu_custom_call.1} parent=39 // pred_fallthru
        _
    $region40: #{tpu_custom_call.1} parent=5 // pred_fallthru
      _
    %p888 = scmp.le.s32.totalorder 2, %s11
    // Predicated region
    $region45: #{tpu_custom_call.1} parent=5 // pred_check
      %p889 = pneg %p888
    $region46: #{tpu_custom_call.1} parent=5 // pred_check_branch
      %891 = sbr.rel (%p889) target = $region48
    $region47: #{tpu_custom_call.1} parent=5 // pred_region
      %s892 = ssub.s32 %s11, 2
      // Predicated region
      $region49: #{tpu_custom_call.1} parent=47 // pred_check
        %p893 = pneg %p155
      $region50: #{tpu_custom_call.1} parent=47 // pred_check_branch
        %895 = sbr.rel (%p893) target = $region52
      $region51: #{tpu_custom_call.1} parent=47 // pred_region
        %p896 = scmp.lt.s32.totalorder %s17, 1
        %s897 = scalar_select %p896, %s17, 1
        %s898 = smul.addr %s897, 4
        %s899 = smul.addr %s898, 8
        %s900 = scalar_lea.vmem %s5, %s899
      $region52: #{tpu_custom_call.1} parent=47 // pred_fallthru
        _
    $region48: #{tpu_custom_call.1} parent=5 // pred_fallthru
      _
  $region6: #{tpu_custom_call.1} parent=0 // loop_footer
    %s15 = sadd.s32 1, %s11
  $region7: #{tpu_custom_call.1} parent=0 // loop_footer_branch
    %10 = sbr.rel target = $region3
  $region8: #{tpu_custom_call.1} parent=0 // loop_exit
    _

</llo_original>
